<compile_context>
chip_gen: v6e
topology: v6e:2x2x1
jax: 0.10.0
libtpu: 0.0.40
codegen_flags: <defaults>
</compile_context>

<pallas_src>
import functools

import numpy as np
import jax
import jax.numpy as jnp
from jax.experimental import pallas as pl
from jax.experimental.pallas import tpu as pltpu


_HALF_LOG_TWO_PI = 0.9189385332046727  # 0.5 * log(2*pi)


# ----------------------------------------------------------------------------
# lgamma(z), z > 0, split as:  lgamma(z) = stirling(z + n) - log(prod)
# where n shifts (<= max_shifts) push the argument to >= 3 and
# prod = z*(z+1)*...*(z+n-1).  Returning (stirling, prod) lets the caller fuse
# the log(prod) of several lgamma calls into a single divide + log.
# ----------------------------------------------------------------------------
def _lgamma_parts(z, *, max_shifts=3):
    thresh = 3.0
    c = z < thresh
    p = jnp.where(c, z, 1.0)
    zs = z + jnp.where(c, 1.0, 0.0)
    for j in range(1, max_shifts):
        zj = z + float(j)
        c = zj < thresh
        p = p * jnp.where(c, zj, 1.0)
        zs = zs + jnp.where(c, 1.0, 0.0)
    # Stirling series at zs >= 3: error bounded by 1/(1680*zs^7) <= 2.7e-7.
    inv = pl.reciprocal(zs, approx=True)      # EUP vrcp; error scaled by <=1/36
    inv2 = inv * inv
    corr = inv * (1.0 / 12.0 + inv2 * (-1.0 / 360.0 + inv2 * (1.0 / 1260.0)))
    s = (zs - 0.5) * jnp.log(zs) - zs + _HALF_LOG_TWO_PI + corr
    return s, p


# ----------------------------------------------------------------------------
# Kernel: one row-block per grid step, emits an (8, N) partial-sum block.
# ----------------------------------------------------------------------------
def _zinb_kernel(x_ref, mean_ref, disp_ref, pi_ref, sf_ref, out_ref, *,
                 ridge_lambda, block_rows, n_cols, valid_rows):
    eps = 1e-10
    f32 = jnp.float32
    x = x_ref[...].astype(f32)
    mu = mean_ref[...].astype(f32) * sf_ref[...].astype(f32)   # mean * scale
    d = disp_ref[...].astype(f32)
    pi = pi_ref[...].astype(f32)

    d_eps = d + eps
    ld = jnp.log(d_eps)                        # log(disp + eps)
    ldm = jnp.log(d + mu + eps)                # log(disp + mean + eps)
    lm = jnp.log(mu + eps)                     # log(mean + eps)

    # t1 = lgamma(disp+eps) + lgamma(x+1) - lgamma(x+disp+eps)
    s_d, p_d = _lgamma_parts(d_eps)
    s_x1, p_x1 = _lgamma_parts(x + 1.0, max_shifts=2)   # x >= 0 => arg >= 1
    s_xd, p_xd = _lgamma_parts(x + d_eps)
    # Fuse the three shift-product logs into one divide + one log.
    # (p in (0, 6], so the product/ratio is far from f32 overflow/underflow.)
    t1 = s_d + s_x1 - s_xd - jnp.log(p_d * p_x1 / p_xd)

    # log(1 + mean/(disp+eps)) == ldm - ld  (no divide);
    # log(disp+eps) - log(mean+eps) == ld - lm.
    t2 = (d + x) * (ldm - ld) + x * (ld - lm)
    nb_case = t1 + t2 - jnp.log(1.0 - pi + eps)

    # (disp/(disp+mean+eps))**disp == exp(disp*(ld - ldm)); folding eps into
    # ld makes disp == 0 give exp(0) = 1, matching pow(0, 0) = 1.
    zero_nb = jnp.exp(d * (ld - ldm))
    zero_case = -jnp.log(pi + (1.0 - pi) * zero_nb + eps)

    result = jnp.where(x <= 1e-8, zero_case, nb_case)
    if ridge_lambda > 0.0:
        result = result + ridge_lambda * jnp.square(pi)

    result = jnp.broadcast_to(result, (block_rows, n_cols))
    if valid_rows is not None:
        # Ragged trailing block: rows past the array hold unspecified data;
        # remove them with a select so NaN/Inf cannot reach the partial sums.
        row0 = pl.program_id(0) * block_rows
        rows = jax.lax.broadcasted_iota(jnp.int32, (block_rows, 1), 0) + row0
        result = jnp.where(rows < valid_rows, result, 0.0)

    # Per-block partial sums folded to a dense, aligned (8, N) slab
    # (sublane-group vector adds only; full reduction + mean finish outside).
    out_ref[...] = jnp.sum(result.reshape(block_rows // 8, 8, n_cols), axis=0)


# ----------------------------------------------------------------------------
# Wrapper helpers
# ----------------------------------------------------------------------------
def _round_up(v, m):
    return ((v + m - 1) // m) * m


def _prep(a):
    a = jnp.asarray(a)
    if a.dtype == jnp.bfloat16:
        return a                      # keep bf16: half the HBM read bytes
    return a.astype(jnp.float32)


def _classify_2d(a, full_shape, m_rows, n_cols):
    """2-D operand layout without materializing broadcasts along constant axes."""
    if a.ndim == 0:
        return a.reshape(1, 1), "scalar"
    shp = (1,) * (len(full_shape) - a.ndim) + a.shape
    a = a.reshape(shp)
    rows_bcast = all(s == 1 for s in shp[:-1])
    cols_bcast = shp[-1] == 1 and n_cols != 1
    if rows_bcast and cols_bcast:
        return a.reshape(1, 1), "scalar"
    if cols_bcast:                             # e.g. scale_factor (B, 1)
        a = jnp.broadcast_to(a, full_shape[:-1] + (1,))
        return a.reshape(m_rows, 1), "col"
    if rows_bcast:                             # e.g. per-gene parameter (1, G)
        return a.reshape(1, n_cols), "row"
    a = jnp.broadcast_to(a, full_shape)
    return a.reshape(m_rows, n_cols), "full"


def _block_spec(kind, tm, n_cols):
    if kind == "full":
        return pl.BlockSpec((tm, n_cols), lambda i: (i, 0))
    if kind == "col":
        return pl.BlockSpec((tm, 1), lambda i: (i, 0))
    if kind == "row":
        return pl.BlockSpec((1, n_cols), lambda i: (0, 0))
    return pl.BlockSpec((1, 1), lambda i: (0, 0))


def _padded_block_bytes(rows, cols, itemsize):
    return _round_up(max(int(rows), 1), 8) * _round_up(max(int(cols), 1), 128) * itemsize


def _choose_tiling(m_rows, n_cols, kinds, itemsizes, block_rows):
    # Generation-aware targets (v5e/v6e: 128 MiB VMEM; v7x: 64 MiB, 2 TCs).
    try:
        info = pltpu.get_tpu_info()
        vmem_cap = int(getattr(info, "vmem_capacity_bytes", 0)) or (64 << 20)
    except Exception:
        vmem_cap = 64 << 20
    if vmem_cap >= (100 << 20):
        target_block_bytes, vmem_limit = 4 << 20, 64 << 20
    else:
        target_block_bytes, vmem_limit = 2 << 20, 32 << 20

    max_item = max(itemsizes)
    if block_rows is None:
        tm = max(8, (target_block_bytes // (max_item * n_cols)) // 8 * 8)
        tm = min(tm, 4096)
        if m_rows >= 16:
            # >= 2 grid steps so v7x's two TensorCores both get work
            # (negligible cost on the single-TC v5e/v6e).
            tm = min(tm, _round_up((m_rows + 1) // 2, 8))
    else:
        tm = max(8, (int(block_rows) // 8) * 8)
    tm = min(tm, _round_up(m_rows, 8))

    def vmem_needed(t):
        total = 0
        for kind, isz in zip(kinds, itemsizes):
            if kind == "full":
                total += _padded_block_bytes(t, n_cols, isz)
            elif kind == "col":
                total += _padded_block_bytes(t, 1, isz)
            elif kind == "row":
                total += _padded_block_bytes(1, n_cols, isz)
            else:
                total += _padded_block_bytes(1, 1, isz)
        total += _padded_block_bytes(8, n_cols, 4)   # partial-sum output block
        return 2 * total                             # double buffering

    while tm > 8 and vmem_needed(tm) > int(0.8 * vmem_limit):
        tm = max(8, ((tm // 2) // 8) * 8)
    need = vmem_needed(tm)
    if need > int(0.8 * vmem_limit):
        # TODO(synk): extremely wide N should use a 2-D grid and tile the lane
        # dimension (tn multiple of 512); for now just raise the scoped limit.
        vmem_limit = min(int(need / 0.8) + (4 << 20), int(0.9 * vmem_cap))
    return tm, vmem_limit


def zinb_loss(x, mean, disp, pi, scale_factor, ridge_lambda=0.0, *,
              block_rows=None):
    arrays = [_prep(a) for a in (x, mean, disp, pi, scale_factor)]
    full_shape = jnp.broadcast_shapes(*(a.shape for a in arrays))
    if len(full_shape) == 0:
        full_shape = (1, 1)
    elif len(full_shape) == 1:
        full_shape = (1,) + tuple(full_shape)
    full_shape = tuple(full_shape)
    n_cols = int(full_shape[-1])
    m_rows = int(np.prod(full_shape[:-1]))
    total = m_rows * n_cols

    ops, kinds = [], []
    for a in arrays:
        a2, kind = _classify_2d(a, full_shape, m_rows, n_cols)
        ops.append(a2)
        kinds.append(kind)

    itemsizes = [op.dtype.itemsize for op in ops]
    tm, vmem_limit = _choose_tiling(m_rows, n_cols, kinds, itemsizes, block_rows)

    grid = ((m_rows + tm - 1) // tm,)          # ragged trailing block is fine
    valid_rows = m_rows if grid[0] * tm != m_rows else None
    in_specs = [_block_spec(kind, tm, n_cols) for kind in kinds]

    kernel = functools.partial(
        _zinb_kernel,
        ridge_lambda=float(ridge_lambda),
        block_rows=tm,
        n_cols=n_cols,
        valid_rows=valid_rows,
    )

    partial_sums = pl.pallas_call(
        kernel,
        out_shape=jax.ShapeDtypeStruct((8 * grid[0], n_cols), jnp.float32),
        grid_spec=pltpu.PrefetchScalarGridSpec(
            num_scalar_prefetch=0,
            grid=grid,
            in_specs=in_specs,
            out_specs=pl.BlockSpec((8, n_cols), lambda i: (i, 0)),
        ),
        compiler_params=pltpu.CompilerParams(
            dimension_semantics=("parallel",),     # lets v7x use both TCs
            vmem_limit_bytes=int(vmem_limit),
        ),
    )(*ops)

    return jnp.sum(partial_sums) / jnp.float32(total)


# ----------------------------------------------------------------------------
# Pure-JAX reference (mirrors the PyTorch forward exactly).
# ----------------------------------------------------------------------------
def zinb_loss_ref(x, mean, disp, pi, scale_factor, ridge_lambda=0.0):
    eps = 1e-10
    lg = jax.scipy.special.gammaln
    mean = mean * scale_factor
    t1 = lg(disp + eps) + lg(x + 1.0) - lg(x + disp + eps)
    t2 = ((disp + x) * jnp.log(1.0 + mean / (disp + eps))
          + x * (jnp.log(disp + eps) - jnp.log(mean + eps)))
    nb_case = t1 + t2 - jnp.log(1.0 - pi + eps)
    zero_nb = jnp.power(disp / (disp + mean + eps), disp)
    zero_case = -jnp.log(pi + (1.0 - pi) * zero_nb + eps)
    result = jnp.where(x <= 1e-8, zero_case, nb_case)
    if ridge_lambda > 0:
        result = result + ridge_lambda * jnp.square(pi)
    return jnp.mean(result)


if __name__ == "__main__":
    key = jax.random.PRNGKey(0)
    kx, km, kd, kp, ks = jax.random.split(key, 5)

    B, G = 8, 256  # batch x genes (typical ZINB autoencoder shapes, small)

    # Count-like data with plenty of zeros (exercises both where() branches).
    x = jax.random.poisson(kx, lam=2.0, shape=(B, G)).astype(jnp.float32)
    mean = (jnp.exp(0.3 * jax.random.normal(km, (B, G))) * 2.0).astype(jnp.float32)
    disp = jnp.exp(0.2 * jax.random.normal(kd, (B, G))).astype(jnp.float32)
    pi = jax.nn.sigmoid(jax.random.normal(kp, (B, G))).astype(jnp.float32)
    scale_factor = jax.random.uniform(ks, (B, 1), minval=0.5,
                                      maxval=1.5).astype(jnp.float32)

    for rl in (0.0, 0.5):
        loss = jax.block_until_ready(
            zinb_loss(x, mean, disp, pi, scale_factor, ridge_lambda=rl))
        ref = zinb_loss_ref(x, mean, disp, pi, scale_factor, ridge_lambda=rl)
        assert jnp.isfinite(loss), f"non-finite loss: {loss}"
        assert jnp.allclose(loss, ref, rtol=1e-3, atol=1e-3), (rl, loss, ref)

    # Multi-block grid with a ragged trailing block (no wrapper-side padding),
    # plus a few large counts that exercise the Stirling path (the previous
    # rational-lgamma form overflowed f32 for x ~> 6e4).
    B2 = 20
    x2 = jax.random.poisson(kx, lam=2.0, shape=(B2, G)).astype(jnp.float32)
    x2 = x2.at[3, 7].set(7.0e4).at[17, 101].set(9.5e4)
    mean2 = (jnp.exp(0.3 * jax.random.normal(km, (B2, G))) * 2.0).astype(jnp.float32)
    disp2 = jnp.exp(0.2 * jax.random.normal(kd, (B2, G))).astype(jnp.float32)
    pi2 = jax.nn.sigmoid(jax.random.normal(kp, (B2, G))).astype(jnp.float32)
    sf2 = jax.random.uniform(ks, (B2, 1), minval=0.5, maxval=1.5).astype(jnp.float32)

    ref2 = zinb_loss_ref(x2, mean2, disp2, pi2, sf2)

    loss2 = jax.block_until_ready(zinb_loss(x2, mean2, disp2, pi2, sf2))
    assert jnp.isfinite(loss2), f"non-finite loss: {loss2}"
    assert jnp.allclose(loss2, ref2, rtol=1e-3, atol=1e-3), (loss2, ref2)

    # Explicit small block size: 3 grid steps, last one ragged.
    loss3 = jax.block_until_ready(
        zinb_loss(x2, mean2, disp2, pi2, sf2, block_rows=8))
    assert jnp.allclose(loss3, ref2, rtol=1e-3, atol=1e-3), (loss3, ref2)

    print("KERNEL_OK")
</pallas_src>

<mosaic_0001>
module attributes {stable_mosaic.version = 11 : i64} {
  func.func @_zinb_kernel(%arg0: i32, %arg1: memref<8x256xf32, #tpu.memory_space<vmem>>, %arg2: memref<8x256xf32, #tpu.memory_space<vmem>>, %arg3: memref<8x256xf32, #tpu.memory_space<vmem>>, %arg4: memref<8x256xf32, #tpu.memory_space<vmem>>, %arg5: memref<8x1xf32, #tpu.memory_space<vmem>>, %arg6: memref<8x256xf32, #tpu.memory_space<vmem>>) attributes {dimension_semantics = [#tpu.dimension_semantics<parallel>], iteration_bounds = array<i64: 1>, scalar_prefetch = 0 : i64, scratch_operands = 0 : i64, tpu.core_type = #tpu.core_type<tc>, window_params = [{transform_indices = @transform_0, window_bounds = array<i64: 8, 256>}, {transform_indices = @transform_1, window_bounds = array<i64: 8, 256>}, {transform_indices = @transform_2, window_bounds = array<i64: 8, 256>}, {transform_indices = @transform_3, window_bounds = array<i64: 8, 256>}, {transform_indices = @transform_4, window_bounds = array<i64: 8, 1>}, {transform_indices = @transform_5, window_bounds = array<i64: 8, 256>}]} {
    %c0 = arith.constant 0 : index
    %c0_0 = arith.constant 0 : index
    %0 = vector.load %arg1[%c0, %c0_0] : memref<8x256xf32, #tpu.memory_space<vmem>>, vector<8x256xf32>
    %c0_1 = arith.constant 0 : index
    %c0_2 = arith.constant 0 : index
    %1 = vector.load %arg2[%c0_1, %c0_2] : memref<8x256xf32, #tpu.memory_space<vmem>>, vector<8x256xf32>
    %c0_3 = arith.constant 0 : index
    %c0_4 = arith.constant 0 : index
    %2 = vector.load %arg5[%c0_3, %c0_4] : memref<8x1xf32, #tpu.memory_space<vmem>>, vector<8x1xf32>
    %3 = vector.broadcast %2 : vector<8x1xf32> to vector<8x256xf32>
    %4 = arith.mulf %1, %3 : vector<8x256xf32>
    %c0_5 = arith.constant 0 : index
    %c0_6 = arith.constant 0 : index
    %5 = vector.load %arg3[%c0_5, %c0_6] : memref<8x256xf32, #tpu.memory_space<vmem>>, vector<8x256xf32>
    %c0_7 = arith.constant 0 : index
    %c0_8 = arith.constant 0 : index
    %6 = vector.load %arg4[%c0_7, %c0_8] : memref<8x256xf32, #tpu.memory_space<vmem>>, vector<8x256xf32>
    %cst = arith.constant 1.000000e-10 : f32
    %7 = vector.broadcast %cst : f32 to vector<8x256xf32>
    %8 = arith.addf %5, %7 : vector<8x256xf32>
    %9 = math.log %8 : vector<8x256xf32>
    %10 = arith.addf %5, %4 : vector<8x256xf32>
    %cst_9 = arith.constant 1.000000e-10 : f32
    %11 = vector.broadcast %cst_9 : f32 to vector<8x256xf32>
    %12 = arith.addf %10, %11 : vector<8x256xf32>
    %13 = math.log %12 : vector<8x256xf32>
    %cst_10 = arith.constant 1.000000e-10 : f32
    %14 = vector.broadcast %cst_10 : f32 to vector<8x256xf32>
    %15 = arith.addf %4, %14 : vector<8x256xf32>
    %16 = math.log %15 : vector<8x256xf32>
    %cst_11 = arith.constant 3.000000e+00 : f32
    %17 = vector.broadcast %cst_11 : f32 to vector<8x256xf32>
    %18 = arith.cmpf olt, %8, %17 : vector<8x256xf32>
    %cst_12 = arith.constant 1.000000e+00 : f32
    %19 = vector.broadcast %cst_12 : f32 to vector<8x256xf32>
    %20 = arith.select %18, %8, %19 : vector<8x256xi1>, vector<8x256xf32>
    %cst_13 = arith.constant 1.000000e+00 : f32
    %cst_14 = arith.constant 0.000000e+00 : f32
    %21 = vector.broadcast %cst_13 : f32 to vector<8x256xf32>
    %22 = vector.broadcast %cst_14 : f32 to vector<8x256xf32>
    %23 = arith.select %18, %21, %22 : vector<8x256xi1>, vector<8x256xf32>
    %24 = arith.addf %8, %23 : vector<8x256xf32>
    %cst_15 = arith.constant 1.000000e+00 : f32
    %25 = vector.broadcast %cst_15 : f32 to vector<8x256xf32>
    %26 = arith.addf %8, %25 : vector<8x256xf32>
    %cst_16 = arith.constant 3.000000e+00 : f32
    %27 = vector.broadcast %cst_16 : f32 to vector<8x256xf32>
    %28 = arith.cmpf olt, %26, %27 : vector<8x256xf32>
    %cst_17 = arith.constant 1.000000e+00 : f32
    %29 = vector.broadcast %cst_17 : f32 to vector<8x256xf32>
    %30 = arith.select %28, %26, %29 : vector<8x256xi1>, vector<8x256xf32>
    %31 = arith.mulf %20, %30 : vector<8x256xf32>
    %cst_18 = arith.constant 1.000000e+00 : f32
    %cst_19 = arith.constant 0.000000e+00 : f32
    %32 = vector.broadcast %cst_18 : f32 to vector<8x256xf32>
    %33 = vector.broadcast %cst_19 : f32 to vector<8x256xf32>
    %34 = arith.select %28, %32, %33 : vector<8x256xi1>, vector<8x256xf32>
    %35 = arith.addf %24, %34 : vector<8x256xf32>
    %cst_20 = arith.constant 2.000000e+00 : f32
    %36 = vector.broadcast %cst_20 : f32 to vector<8x256xf32>
    %37 = arith.addf %8, %36 : vector<8x256xf32>
    %cst_21 = arith.constant 3.000000e+00 : f32
    %38 = vector.broadcast %cst_21 : f32 to vector<8x256xf32>
    %39 = arith.cmpf olt, %37, %38 : vector<8x256xf32>
    %cst_22 = arith.constant 1.000000e+00 : f32
    %40 = vector.broadcast %cst_22 : f32 to vector<8x256xf32>
    %41 = arith.select %39, %37, %40 : vector<8x256xi1>, vector<8x256xf32>
    %42 = arith.mulf %31, %41 : vector<8x256xf32>
    %cst_23 = arith.constant 1.000000e+00 : f32
    %cst_24 = arith.constant 0.000000e+00 : f32
    %43 = vector.broadcast %cst_23 : f32 to vector<8x256xf32>
    %44 = vector.broadcast %cst_24 : f32 to vector<8x256xf32>
    %45 = arith.select %39, %43, %44 : vector<8x256xi1>, vector<8x256xf32>
    %46 = arith.addf %35, %45 : vector<8x256xf32>
    %47 = tpu.reciprocal %46 {approx = true} : vector<8x256xf32> -> vector<8x256xf32>
    %48 = arith.mulf %47, %47 : vector<8x256xf32>
    %cst_25 = arith.constant 7.93650805E-4 : f32
    %49 = vector.broadcast %cst_25 : f32 to vector<8x256xf32>
    %50 = arith.mulf %48, %49 : vector<8x256xf32>
    %cst_26 = arith.constant -0.00277777785 : f32
    %51 = vector.broadcast %cst_26 : f32 to vector<8x256xf32>
    %52 = arith.addf %51, %50 : vector<8x256xf32>
    %53 = arith.mulf %48, %52 : vector<8x256xf32>
    %cst_27 = arith.constant 0.0833333358 : f32
    %54 = vector.broadcast %cst_27 : f32 to vector<8x256xf32>
    %55 = arith.addf %54, %53 : vector<8x256xf32>
    %56 = arith.mulf %47, %55 : vector<8x256xf32>
    %cst_28 = arith.constant 5.000000e-01 : f32
    %57 = vector.broadcast %cst_28 : f32 to vector<8x256xf32>
    %58 = arith.subf %46, %57 : vector<8x256xf32>
    %59 = math.log %46 : vector<8x256xf32>
    %60 = arith.mulf %58, %59 : vector<8x256xf32>
    %61 = arith.subf %60, %46 : vector<8x256xf32>
    %cst_29 = arith.constant 0.918938517 : f32
    %62 = vector.broadcast %cst_29 : f32 to vector<8x256xf32>
    %63 = arith.addf %61, %62 : vector<8x256xf32>
    %64 = arith.addf %63, %56 : vector<8x256xf32>
    %cst_30 = arith.constant 1.000000e+00 : f32
    %65 = vector.broadcast %cst_30 : f32 to vector<8x256xf32>
    %66 = arith.addf %0, %65 : vector<8x256xf32>
    %cst_31 = arith.constant 3.000000e+00 : f32
    %67 = vector.broadcast %cst_31 : f32 to vector<8x256xf32>
    %68 = arith.cmpf olt, %66, %67 : vector<8x256xf32>
    %cst_32 = arith.constant 1.000000e+00 : f32
    %69 = vector.broadcast %cst_32 : f32 to vector<8x256xf32>
    %70 = arith.select %68, %66, %69 : vector<8x256xi1>, vector<8x256xf32>
    %cst_33 = arith.constant 1.000000e+00 : f32
    %cst_34 = arith.constant 0.000000e+00 : f32
    %71 = vector.broadcast %cst_33 : f32 to vector<8x256xf32>
    %72 = vector.broadcast %cst_34 : f32 to vector<8x256xf32>
    %73 = arith.select %68, %71, %72 : vector<8x256xi1>, vector<8x256xf32>
    %74 = arith.addf %66, %73 : vector<8x256xf32>
    %cst_35 = arith.constant 1.000000e+00 : f32
    %75 = vector.broadcast %cst_35 : f32 to vector<8x256xf32>
    %76 = arith.addf %66, %75 : vector<8x256xf32>
    %cst_36 = arith.constant 3.000000e+00 : f32
    %77 = vector.broadcast %cst_36 : f32 to vector<8x256xf32>
    %78 = arith.cmpf olt, %76, %77 : vector<8x256xf32>
    %cst_37 = arith.constant 1.000000e+00 : f32
    %79 = vector.broadcast %cst_37 : f32 to vector<8x256xf32>
    %80 = arith.select %78, %76, %79 : vector<8x256xi1>, vector<8x256xf32>
    %81 = arith.mulf %70, %80 : vector<8x256xf32>
    %cst_38 = arith.constant 1.000000e+00 : f32
    %cst_39 = arith.constant 0.000000e+00 : f32
    %82 = vector.broadcast %cst_38 : f32 to vector<8x256xf32>
    %83 = vector.broadcast %cst_39 : f32 to vector<8x256xf32>
    %84 = arith.select %78, %82, %83 : vector<8x256xi1>, vector<8x256xf32>
    %85 = arith.addf %74, %84 : vector<8x256xf32>
    %86 = tpu.reciprocal %85 {approx = true} : vector<8x256xf32> -> vector<8x256xf32>
    %87 = arith.mulf %86, %86 : vector<8x256xf32>
    %cst_40 = arith.constant 7.93650805E-4 : f32
    %88 = vector.broadcast %cst_40 : f32 to vector<8x256xf32>
    %89 = arith.mulf %87, %88 : vector<8x256xf32>
    %cst_41 = arith.constant -0.00277777785 : f32
    %90 = vector.broadcast %cst_41 : f32 to vector<8x256xf32>
    %91 = arith.addf %90, %89 : vector<8x256xf32>
    %92 = arith.mulf %87, %91 : vector<8x256xf32>
    %cst_42 = arith.constant 0.0833333358 : f32
    %93 = vector.broadcast %cst_42 : f32 to vector<8x256xf32>
    %94 = arith.addf %93, %92 : vector<8x256xf32>
    %95 = arith.mulf %86, %94 : vector<8x256xf32>
    %cst_43 = arith.constant 5.000000e-01 : f32
    %96 = vector.broadcast %cst_43 : f32 to vector<8x256xf32>
    %97 = arith.subf %85, %96 : vector<8x256xf32>
    %98 = math.log %85 : vector<8x256xf32>
    %99 = arith.mulf %97, %98 : vector<8x256xf32>
    %100 = arith.subf %99, %85 : vector<8x256xf32>
    %cst_44 = arith.constant 0.918938517 : f32
    %101 = vector.broadcast %cst_44 : f32 to vector<8x256xf32>
    %102 = arith.addf %100, %101 : vector<8x256xf32>
    %103 = arith.addf %102, %95 : vector<8x256xf32>
    %104 = arith.addf %0, %8 : vector<8x256xf32>
    %cst_45 = arith.constant 3.000000e+00 : f32
    %105 = vector.broadcast %cst_45 : f32 to vector<8x256xf32>
    %106 = arith.cmpf olt, %104, %105 : vector<8x256xf32>
    %cst_46 = arith.constant 1.000000e+00 : f32
    %107 = vector.broadcast %cst_46 : f32 to vector<8x256xf32>
    %108 = arith.select %106, %104, %107 : vector<8x256xi1>, vector<8x256xf32>
    %cst_47 = arith.constant 1.000000e+00 : f32
    %cst_48 = arith.constant 0.000000e+00 : f32
    %109 = vector.broadcast %cst_47 : f32 to vector<8x256xf32>
    %110 = vector.broadcast %cst_48 : f32 to vector<8x256xf32>
    %111 = arith.select %106, %109, %110 : vector<8x256xi1>, vector<8x256xf32>
    %112 = arith.addf %104, %111 : vector<8x256xf32>
    %cst_49 = arith.constant 1.000000e+00 : f32
    %113 = vector.broadcast %cst_49 : f32 to vector<8x256xf32>
    %114 = arith.addf %104, %113 : vector<8x256xf32>
    %cst_50 = arith.constant 3.000000e+00 : f32
    %115 = vector.broadcast %cst_50 : f32 to vector<8x256xf32>
    %116 = arith.cmpf olt, %114, %115 : vector<8x256xf32>
    %cst_51 = arith.constant 1.000000e+00 : f32
    %117 = vector.broadcast %cst_51 : f32 to vector<8x256xf32>
    %118 = arith.select %116, %114, %117 : vector<8x256xi1>, vector<8x256xf32>
    %119 = arith.mulf %108, %118 : vector<8x256xf32>
    %cst_52 = arith.constant 1.000000e+00 : f32
    %cst_53 = arith.constant 0.000000e+00 : f32
    %120 = vector.broadcast %cst_52 : f32 to vector<8x256xf32>
    %121 = vector.broadcast %cst_53 : f32 to vector<8x256xf32>
    %122 = arith.select %116, %120, %121 : vector<8x256xi1>, vector<8x256xf32>
    %123 = arith.addf %112, %122 : vector<8x256xf32>
    %cst_54 = arith.constant 2.000000e+00 : f32
    %124 = vector.broadcast %cst_54 : f32 to vector<8x256xf32>
    %125 = arith.addf %104, %124 : vector<8x256xf32>
    %cst_55 = arith.constant 3.000000e+00 : f32
    %126 = vector.broadcast %cst_55 : f32 to vector<8x256xf32>
    %127 = arith.cmpf olt, %125, %126 : vector<8x256xf32>
    %cst_56 = arith.constant 1.000000e+00 : f32
    %128 = vector.broadcast %cst_56 : f32 to vector<8x256xf32>
    %129 = arith.select %127, %125, %128 : vector<8x256xi1>, vector<8x256xf32>
    %130 = arith.mulf %119, %129 : vector<8x256xf32>
    %cst_57 = arith.constant 1.000000e+00 : f32
    %cst_58 = arith.constant 0.000000e+00 : f32
    %131 = vector.broadcast %cst_57 : f32 to vector<8x256xf32>
    %132 = vector.broadcast %cst_58 : f32 to vector<8x256xf32>
    %133 = arith.select %127, %131, %132 : vector<8x256xi1>, vector<8x256xf32>
    %134 = arith.addf %123, %133 : vector<8x256xf32>
    %135 = tpu.reciprocal %134 {approx = true} : vector<8x256xf32> -> vector<8x256xf32>
    %136 = arith.mulf %135, %135 : vector<8x256xf32>
    %cst_59 = arith.constant 7.93650805E-4 : f32
    %137 = vector.broadcast %cst_59 : f32 to vector<8x256xf32>
    %138 = arith.mulf %136, %137 : vector<8x256xf32>
    %cst_60 = arith.constant -0.00277777785 : f32
    %139 = vector.broadcast %cst_60 : f32 to vector<8x256xf32>
    %140 = arith.addf %139, %138 : vector<8x256xf32>
    %141 = arith.mulf %136, %140 : vector<8x256xf32>
    %cst_61 = arith.constant 0.0833333358 : f32
    %142 = vector.broadcast %cst_61 : f32 to vector<8x256xf32>
    %143 = arith.addf %142, %141 : vector<8x256xf32>
    %144 = arith.mulf %135, %143 : vector<8x256xf32>
    %cst_62 = arith.constant 5.000000e-01 : f32
    %145 = vector.broadcast %cst_62 : f32 to vector<8x256xf32>
    %146 = arith.subf %134, %145 : vector<8x256xf32>
    %147 = math.log %134 : vector<8x256xf32>
    %148 = arith.mulf %146, %147 : vector<8x256xf32>
    %149 = arith.subf %148, %134 : vector<8x256xf32>
    %cst_63 = arith.constant 0.918938517 : f32
    %150 = vector.broadcast %cst_63 : f32 to vector<8x256xf32>
    %151 = arith.addf %149, %150 : vector<8x256xf32>
    %152 = arith.addf %151, %144 : vector<8x256xf32>
    %153 = arith.addf %64, %103 : vector<8x256xf32>
    %154 = arith.subf %153, %152 : vector<8x256xf32>
    %155 = arith.mulf %42, %81 : vector<8x256xf32>
    %156 = arith.divf %155, %130 : vector<8x256xf32>
    %157 = math.log %156 : vector<8x256xf32>
    %158 = arith.subf %154, %157 : vector<8x256xf32>
    %159 = arith.addf %5, %0 : vector<8x256xf32>
    %160 = arith.subf %13, %9 : vector<8x256xf32>
    %161 = arith.mulf %159, %160 : vector<8x256xf32>
    %162 = arith.subf %9, %16 : vector<8x256xf32>
    %163 = arith.mulf %0, %162 : vector<8x256xf32>
    %164 = arith.addf %161, %163 : vector<8x256xf32>
    %165 = arith.addf %158, %164 : vector<8x256xf32>
    %cst_64 = arith.constant 1.000000e+00 : f32
    %166 = vector.broadcast %cst_64 : f32 to vector<8x256xf32>
    %167 = arith.subf %166, %6 : vector<8x256xf32>
    %cst_65 = arith.constant 1.000000e-10 : f32
    %168 = vector.broadcast %cst_65 : f32 to vector<8x256xf32>
    %169 = arith.addf %167, %168 : vector<8x256xf32>
    %170 = math.log %169 : vector<8x256xf32>
    %171 = arith.subf %165, %170 : vector<8x256xf32>
    %172 = arith.subf %9, %13 : vector<8x256xf32>
    %173 = arith.mulf %5, %172 : vector<8x256xf32>
    %174 = math.exp %173 : vector<8x256xf32>
    %cst_66 = arith.constant 1.000000e+00 : f32
    %175 = vector.broadcast %cst_66 : f32 to vector<8x256xf32>
    %176 = arith.subf %175, %6 : vector<8x256xf32>
    %177 = arith.mulf %176, %174 : vector<8x256xf32>
    %178 = arith.addf %6, %177 : vector<8x256xf32>
    %cst_67 = arith.constant 1.000000e-10 : f32
    %179 = vector.broadcast %cst_67 : f32 to vector<8x256xf32>
    %180 = arith.addf %178, %179 : vector<8x256xf32>
    %181 = math.log %180 : vector<8x256xf32>
    %cst_68 = arith.constant 0.000000e+00 : f32
    %182 = vector.broadcast %cst_68 : f32 to vector<8x256xf32>
    %183 = arith.subf %182, %181 : vector<8x256xf32>
    %cst_69 = arith.constant 9.99999993E-9 : f32
    %184 = vector.broadcast %cst_69 : f32 to vector<8x256xf32>
    %185 = arith.cmpf ole, %0, %184 : vector<8x256xf32>
    %186 = arith.select %185, %183, %171 : vector<8x256xi1>, vector<8x256xf32>
    %187 = vector.shape_cast %186 : vector<8x256xf32> to vector<1x8x256xf32>
    %cst_70 = arith.constant dense<0.000000e+00> : vector<8x256xf32>
    %188 = vector.multi_reduction <add>, %187, %cst_70 [0] : vector<1x8x256xf32> to vector<8x256xf32>
    %c0_71 = arith.constant 0 : index
    %c0_72 = arith.constant 0 : index
    %189 = vector.load %arg6[%c0_71, %c0_72] : memref<8x256xf32, #tpu.memory_space<vmem>>, vector<8x256xf32>
    tpu.vector_store %arg6[%c0_71, %c0_72], %188 {strides = array<i32>} : memref<8x256xf32, #tpu.memory_space<vmem>>, vector<8x256xf32>,
    return
  }
  func.func @transform_0(%arg0: i32) -> (i32, i32) {
    %c0_i32 = arith.constant 0 : i32
    %c0_i32_0 = arith.constant 0 : i32
    return %arg0, %c0_i32 : i32, i32
  }
  func.func @transform_1(%arg0: i32) -> (i32, i32) {
    %c0_i32 = arith.constant 0 : i32
    %c0_i32_0 = arith.constant 0 : i32
    return %arg0, %c0_i32 : i32, i32
  }
  func.func @transform_2(%arg0: i32) -> (i32, i32) {
    %c0_i32 = arith.constant 0 : i32
    %c0_i32_0 = arith.constant 0 : i32
    return %arg0, %c0_i32 : i32, i32
  }
  func.func @transform_3(%arg0: i32) -> (i32, i32) {
    %c0_i32 = arith.constant 0 : i32
    %c0_i32_0 = arith.constant 0 : i32
    return %arg0, %c0_i32 : i32, i32
  }
  func.func @transform_4(%arg0: i32) -> (i32, i32) {
    %c0_i32 = arith.constant 0 : i32
    %c0_i32_0 = arith.constant 0 : i32
    return %arg0, %c0_i32 : i32, i32
  }
  func.func @transform_5(%arg0: i32) -> (i32, i32) {
    %c0_i32 = arith.constant 0 : i32
    %c0_i32_0 = arith.constant 0 : i32
    return %arg0, %c0_i32 : i32, i32
  }
}

</mosaic_0001>

<llo_original>
// kernel: tpu_custom_call.1
$region0: #{tpu_custom_call.1}
  #allocation0 [shape = 'u32[]', space=smem, size = 0x4, offset = 0x4, fixed_abs, tag = 'smem constant byte address 0x4 - core index']
  #allocation1 [shape = 'u32[144,128]{1,0:T(1,128)}', space=vmem, size = 0x12000, scoped, tag = 'internal scratch']
  %s0 = inlined_call_operand.hbm [shape: f32[8,256], index: 0, kind: input, shape index: {}]
  %s1 = inlined_call_operand.hbm [shape: f32[8,256], index: 1, kind: input, shape index: {}]
  %s2 = inlined_call_operand.hbm [shape: f32[8,256], index: 2, kind: input, shape index: {}]
  %s3 = inlined_call_operand.hbm [shape: f32[8,256], index: 3, kind: input, shape index: {}]
  %s4 = inlined_call_operand.vmem [shape: f32[8,1], index: 4, kind: input, shape index: {}]
  %s5 = inlined_call_operand.hbm [shape: f32[8,256], index: 5, kind: output, shape index: {}]
  %s6 = sld [smem:[#allocation0]]
  $region46: #{tpu_custom_call.1} parent=0
    _
  %s8 = ssub.s32 1, %s6
  %s9 = scalar_select 0, %s8, %s6
  $region1: #{tpu_custom_call.1} parent=0
    #allocation2 [shape = 'u8[8192]{0}', space=vmem, size = 0x2000, scoped, tag = 'input window, operand 0, single buffered']
    #allocation3 [shape = 's32[1]{0}', space=sflag, size = 0x4, scoped, tag = 'scoped memory for tpu_custom_call.1']
    #allocation4 [shape = 's32[1]{0}', space=sflag, size = 0x4, scoped, tag = 'scoped memory for tpu_custom_call.1']
    #allocation5 [shape = 'u8[8192]{0}', space=vmem, size = 0x2000, scoped, tag = 'input window, operand 1, single buffered']
    #allocation6 [shape = 's32[1]{0}', space=sflag, size = 0x4, scoped, tag = 'scoped memory for tpu_custom_call.1']
    #allocation7 [shape = 'u8[8192]{0}', space=vmem, size = 0x2000, scoped, tag = 'input window, operand 2, single buffered']
    #allocation8 [shape = 'u8[8192]{0}', space=vmem, size = 0x2000, scoped, tag = 'input window, operand 3, single buffered']
    #allocation9 [shape = 's32[1]{0}', space=sflag, size = 0x4, scoped, tag = 'scoped memory for tpu_custom_call.1']
    #allocation10 [shape = 'u8[8192]{0}', space=vmem, size = 0x2000, scoped, tag = 'output window, operand 0, single buffered']
    %10 = vsyncpa [#allocation3], 0
    %11 = vsyncpa [#allocation6], 0
    %12 = vsyncpa [#allocation9], 0
    %13 = vsyncpa [#allocation4], 0
    // Predicated region
    $region2: #{tpu_custom_call.1} parent=1 // pred_check
      _
    $region3: #{tpu_custom_call.1} parent=1 // pred_check_branch
      %15 = sbr.rel (0) target = $region5
    $region4: #{tpu_custom_call.1} parent=1 // pred_region
      %s17 = ssub.s32 256, 256
      %18 = vsyncadd [#allocation3], %s17
      %s20 = sshll.u32 [#allocation2], 4
      %s21 = int_to_ptr.vmem [resolvable:$true] %s20
      %23 = dma.hbm_to_vmem [thread:$0]  %s0, 256, %s21, [#allocation3]
    $region5: #{tpu_custom_call.1} parent=1 // pred_fallthru
      _
    // Predicated region
    $region6: #{tpu_custom_call.1} parent=1 // pred_check
      _
    $region7: #{tpu_custom_call.1} parent=1 // pred_check_branch
      %25 = sbr.rel (0) target = $region9
    $region8: #{tpu_custom_call.1} parent=1 // pred_region
      %s27 = ssub.s32 256, 256
      %28 = vsyncadd [#allocation6], %s27
      %s30 = sshll.u32 [#allocation5], 4
      %s31 = int_to_ptr.vmem [resolvable:$true] %s30
      %33 = dma.hbm_to_vmem [thread:$0]  %s1, 256, %s31, [#allocation6]
    $region9: #{tpu_custom_call.1} parent=1 // pred_fallthru
      _
    // Predicated region
    $region10: #{tpu_custom_call.1} parent=1 // pred_check
      _
    $region11: #{tpu_custom_call.1} parent=1 // pred_check_branch
      %35 = sbr.rel (0) target = $region13
    $region12: #{tpu_custom_call.1} parent=1 // pred_region
      %s37 = ssub.s32 256, 256
      %38 = vsyncadd [#allocation6], %s37
      %s40 = sshll.u32 [#allocation7], 4
      %s41 = int_to_ptr.vmem [resolvable:$true] %s40
      %43 = dma.hbm_to_vmem [thread:$0]  %s2, 256, %s41, [#allocation6]
    $region13: #{tpu_custom_call.1} parent=1 // pred_fallthru
      _
    // Predicated region
    $region14: #{tpu_custom_call.1} parent=1 // pred_check
      _
    $region15: #{tpu_custom_call.1} parent=1 // pred_check_branch
      %45 = sbr.rel (0) target = $region17
    $region16: #{tpu_custom_call.1} parent=1 // pred_region
      %s47 = ssub.s32 256, 256
      %48 = vsyncadd [#allocation9], %s47
      %s50 = sshll.u32 [#allocation8], 4
      %s51 = int_to_ptr.vmem [resolvable:$true] %s50
      %53 = dma.hbm_to_vmem [thread:$0]  %s3, 256, %s51, [#allocation9]
    $region17: #{tpu_custom_call.1} parent=1 // pred_fallthru
      _
    // Predicated region
    $region18: #{tpu_custom_call.1} parent=1 // pred_check
      _
    $region19: #{tpu_custom_call.1} parent=1 // pred_check_branch
      %55 = sbr.rel (0) target = $region21
    $region20: #{tpu_custom_call.1} parent=1 // pred_region
      _
    $region21: #{tpu_custom_call.1} parent=1 // pred_fallthru
      _
    // Predicated region
    $region22: #{tpu_custom_call.1} parent=1 // pred_check
      _
    $region23: #{tpu_custom_call.1} parent=1 // pred_check_branch
      %57 = sbr.rel (0) target = $region25
    $region24: #{tpu_custom_call.1} parent=1 // pred_region
      %58 = dma.done [#allocation3], 256
    $region25: #{tpu_custom_call.1} parent=1 // pred_fallthru
      _
    // Predicated region
    $region26: #{tpu_custom_call.1} parent=1 // pred_check
      _
    $region27: #{tpu_custom_call.1} parent=1 // pred_check_branch
      %60 = sbr.rel (0) target = $region29
    $region28: #{tpu_custom_call.1} parent=1 // pred_region
      %61 = dma.done [#allocation6], 256
    $region29: #{tpu_custom_call.1} parent=1 // pred_fallthru
      _
    // Predicated region
    $region30: #{tpu_custom_call.1} parent=1 // pred_check
      _
    $region31: #{tpu_custom_call.1} parent=1 // pred_check_branch
      %63 = sbr.rel (0) target = $region33
    $region32: #{tpu_custom_call.1} parent=1 // pred_region
      %64 = dma.done [#allocation6], 256
    $region33: #{tpu_custom_call.1} parent=1 // pred_fallthru
      _
    // Predicated region
    $region34: #{tpu_custom_call.1} parent=1 // pred_check
      _
    $region35: #{tpu_custom_call.1} parent=1 // pred_check_branch
      %66 = sbr.rel (0) target = $region37
    $region36: #{tpu_custom_call.1} parent=1 // pred_region
      %67 = dma.done [#allocation9], 256
    $region37: #{tpu_custom_call.1} parent=1 // pred_fallthru
      _
    %v68 = vld [vmem:[#allocation2] sm:$0xff]
    %v69 = vld [vmem:[#allocation2 + $0x8] sm:$0xff]
    %v70 = vld [vmem:[#allocation5] sm:$0xff]
    %v71 = vld [vmem:[#allocation5 + $0x8] sm:$0xff]
    %v72 = vld [vmem:[%s4] sm:$0xff]
    %74 = vset.pattern.permute.xlu0 0
    %75 = vperm.xlu0 %74, %v72
    %v76 = vpop.permute.xlu0 %75
    %v78 = vmul.f32 %v70, %v76
    %v79 = vmul.f32 %v71, %v76
    %v80 = vld [vmem:[#allocation7] sm:$0xff]
    %v81 = vld [vmem:[#allocation7 + $0x8] sm:$0xff]
    %v82 = vld [vmem:[#allocation8] sm:$0xff]
    %v83 = vld [vmem:[#allocation8 + $0x8] sm:$0xff]
    %v84 = vadd.f32 %v80, 1e-10
    %v85 = vadd.f32 %v81, 1e-10
    %v86 = vlog2.pop %v84
    %v87 = vmul.f32 %v86, 0.6931472
    %v88 = vlog2.pop %v85
    %v89 = vmul.f32 %v88, 0.6931472
    %v90 = vadd.f32 %v80, %v78
    %v91 = vadd.f32 %v81, %v79
    %v92 = vadd.f32 %v90, 1e-10
    %v93 = vadd.f32 %v91, 1e-10
    %v94 = vlog2.pop %v92
    %v95 = vmul.f32 %v94, 0.6931472
    %v96 = vlog2.pop %v93
    %v97 = vmul.f32 %v96, 0.6931472
    %v98 = vadd.f32 %v78, 1e-10
    %v99 = vadd.f32 %v79, 1e-10
    %v100 = vlog2.pop %v98
    %v101 = vmul.f32 %v100, 0.6931472
    %v102 = vlog2.pop %v99
    %v103 = vmul.f32 %v102, 0.6931472
    %vm104 = vcmp.lt.f32.partialorder %v84, 3.0
    %vm105 = vcmp.lt.f32.partialorder %v85, 3.0
    %v106 = vsel %vm104, %v84, 1.0
    %v107 = vsel %vm105, %v85, 1.0
    %v108 = vsel %vm104, 1.0, 0.0
    %v109 = vsel %vm105, 1.0, 0.0
    %v110 = vadd.f32 %v84, %v108
    %v111 = vadd.f32 %v85, %v109
    %v112 = vadd.f32 %v84, 1.0
    %v113 = vadd.f32 %v85, 1.0
    %vm114 = vcmp.lt.f32.partialorder %v112, 3.0
    %vm115 = vcmp.lt.f32.partialorder %v113, 3.0
    %v116 = vsel %vm114, %v112, 1.0
    %v117 = vsel %vm115, %v113, 1.0
    %v118 = vmul.f32 %v106, %v116
    %v119 = vmul.f32 %v107, %v117
    %v120 = vsel %vm114, 1.0, 0.0
    %v121 = vsel %vm115, 1.0, 0.0
    %v122 = vadd.f32 %v110, %v120
    %v123 = vadd.f32 %v111, %v121
    %v124 = vadd.f32 %v84, 2.0
    %v125 = vadd.f32 %v85, 2.0
    %vm126 = vcmp.lt.f32.partialorder %v124, 3.0
    %vm127 = vcmp.lt.f32.partialorder %v125, 3.0
    %v128 = vsel %vm126, %v124, 1.0
    %v129 = vsel %vm127, %v125, 1.0
    %v130 = vmul.f32 %v118, %v128
    %v131 = vmul.f32 %v119, %v129
    %v132 = vsel %vm126, 1.0, 0.0
    %v133 = vsel %vm127, 1.0, 0.0
    %v134 = vadd.f32 %v122, %v132
    %v135 = vadd.f32 %v123, %v133
    %v136 = vrcp.pop %v134
    %v137 = vrcp.pop %v135
    %v138 = vmul.f32 %v136, %v136
    %v139 = vmul.f32 %v137, %v137
    %v140 = vmul.f32 %v138, 0.0007936508
    %v141 = vmul.f32 %v139, 0.0007936508
    %v142 = vadd.f32 %v140, -0.0027777778
    %v143 = vadd.f32 %v141, -0.0027777778
    %v144 = vmul.f32 %v138, %v142
    %v145 = vmul.f32 %v139, %v143
    %v146 = vadd.f32 %v144, 0.083333336
    %v147 = vadd.f32 %v145, 0.083333336
    %v148 = vmul.f32 %v136, %v146
    %v149 = vmul.f32 %v137, %v147
    %v150 = vsub.f32 %v134, 0.5
    %v151 = vsub.f32 %v135, 0.5
    %v152 = vlog2.pop %v134
    %v153 = vmul.f32 %v152, 0.6931472
    %v154 = vlog2.pop %v135
    %v155 = vmul.f32 %v154, 0.6931472
    %v156 = vmul.f32 %v150, %v153
    %v157 = vmul.f32 %v151, %v155
    %v158 = vsub.f32 %v156, %v134
    %v159 = vsub.f32 %v157, %v135
    %v160 = vadd.f32 %v158, 0.9189385
    %v161 = vadd.f32 %v159, 0.9189385
    %v162 = vadd.f32 %v160, %v148
    %v163 = vadd.f32 %v161, %v149
    %v164 = vadd.f32 %v68, 1.0
    %v165 = vadd.f32 %v69, 1.0
    %vm166 = vcmp.lt.f32.partialorder %v164, 3.0
    %vm167 = vcmp.lt.f32.partialorder %v165, 3.0
    %v168 = vsel %vm166, %v164, 1.0
    %v169 = vsel %vm167, %v165, 1.0
    %v170 = vsel %vm166, 1.0, 0.0
    %v171 = vsel %vm167, 1.0, 0.0
    %v172 = vadd.f32 %v164, %v170
    %v173 = vadd.f32 %v165, %v171
    %v174 = vadd.f32 %v164, 1.0
    %v175 = vadd.f32 %v165, 1.0
    %vm176 = vcmp.lt.f32.partialorder %v174, 3.0
    %vm177 = vcmp.lt.f32.partialorder %v175, 3.0
    %v178 = vsel %vm176, %v174, 1.0
    %v179 = vsel %vm177, %v175, 1.0
    %v180 = vmul.f32 %v168, %v178
    %v181 = vmul.f32 %v169, %v179
    %v182 = vsel %vm176, 1.0, 0.0
    %v183 = vsel %vm177, 1.0, 0.0
    %v184 = vadd.f32 %v172, %v182
    %v185 = vadd.f32 %v173, %v183
    %v186 = vrcp.pop %v184
    %v187 = vrcp.pop %v185
    %v188 = vmul.f32 %v186, %v186
    %v189 = vmul.f32 %v187, %v187
    %v190 = vmul.f32 %v188, 0.0007936508
    %v191 = vmul.f32 %v189, 0.0007936508
    %v192 = vadd.f32 %v190, -0.0027777778
    %v193 = vadd.f32 %v191, -0.0027777778
    %v194 = vmul.f32 %v188, %v192
    %v195 = vmul.f32 %v189, %v193
    %v196 = vadd.f32 %v194, 0.083333336
    %v197 = vadd.f32 %v195, 0.083333336
    %v198 = vmul.f32 %v186, %v196
    %v199 = vmul.f32 %v187, %v197
    %v200 = vsub.f32 %v184, 0.5
    %v201 = vsub.f32 %v185, 0.5
    %v202 = vlog2.pop %v184
    %v203 = vmul.f32 %v202, 0.6931472
    %v204 = vlog2.pop %v185
    %v205 = vmul.f32 %v204, 0.6931472
    %v206 = vmul.f32 %v200, %v203
    %v207 = vmul.f32 %v201, %v205
    %v208 = vsub.f32 %v206, %v184
    %v209 = vsub.f32 %v207, %v185
    %v210 = vadd.f32 %v208, 0.9189385
    %v211 = vadd.f32 %v209, 0.9189385
    %v212 = vadd.f32 %v210, %v198
    %v213 = vadd.f32 %v211, %v199
    %v214 = vadd.f32 %v68, %v84
    %v215 = vadd.f32 %v69, %v85
    %vm216 = vcmp.lt.f32.partialorder %v214, 3.0
    %vm217 = vcmp.lt.f32.partialorder %v215, 3.0
    %v218 = vsel %vm216, %v214, 1.0
    %v219 = vsel %vm217, %v215, 1.0
    %v220 = vsel %vm216, 1.0, 0.0
    %v221 = vsel %vm217, 1.0, 0.0
    %v222 = vadd.f32 %v214, %v220
    %v223 = vadd.f32 %v215, %v221
    %v224 = vadd.f32 %v214, 1.0
    %v225 = vadd.f32 %v215, 1.0
    %vm226 = vcmp.lt.f32.partialorder %v224, 3.0
    %vm227 = vcmp.lt.f32.partialorder %v225, 3.0
    %v228 = vsel %vm226, %v224, 1.0
    %v229 = vsel %vm227, %v225, 1.0
    %v230 = vmul.f32 %v218, %v228
    %v231 = vmul.f32 %v219, %v229
    %v232 = vsel %vm226, 1.0, 0.0
    %v233 = vsel %vm227, 1.0, 0.0
    %v234 = vadd.f32 %v222, %v232
    %v235 = vadd.f32 %v223, %v233
    %v236 = vadd.f32 %v214, 2.0
    %v237 = vadd.f32 %v215, 2.0
    %vm238 = vcmp.lt.f32.partialorder %v236, 3.0
    %vm239 = vcmp.lt.f32.partialorder %v237, 3.0
    %v240 = vsel %vm238, %v236, 1.0
    %v241 = vsel %vm239, %v237, 1.0
    %v242 = vmul.f32 %v230, %v240
    %v243 = vmul.f32 %v231, %v241
    %v244 = vsel %vm238, 1.0, 0.0
    %v245 = vsel %vm239, 1.0, 0.0
    %v246 = vadd.f32 %v234, %v244
    %v247 = vadd.f32 %v235, %v245
    %v248 = vrcp.pop %v246
    %v249 = vrcp.pop %v247
    %v250 = vmul.f32 %v248, %v248
    %v251 = vmul.f32 %v249, %v249
    %v252 = vmul.f32 %v250, 0.0007936508
    %v253 = vmul.f32 %v251, 0.0007936508
    %v254 = vadd.f32 %v252, -0.0027777778
    %v255 = vadd.f32 %v253, -0.0027777778
    %v256 = vmul.f32 %v250, %v254
    %v257 = vmul.f32 %v251, %v255
    %v258 = vadd.f32 %v256, 0.083333336
    %v259 = vadd.f32 %v257, 0.083333336
    %v260 = vmul.f32 %v248, %v258
    %v261 = vmul.f32 %v249, %v259
    %v262 = vsub.f32 %v246, 0.5
    %v263 = vsub.f32 %v247, 0.5
    %v264 = vlog2.pop %v246
    %v265 = vmul.f32 %v264, 0.6931472
    %v266 = vlog2.pop %v247
    %v267 = vmul.f32 %v266, 0.6931472
    %v268 = vmul.f32 %v262, %v265
    %v269 = vmul.f32 %v263, %v267
    %v270 = vsub.f32 %v268, %v246
    %v271 = vsub.f32 %v269, %v247
    %v272 = vadd.f32 %v270, 0.9189385
    %v273 = vadd.f32 %v271, 0.9189385
    %v274 = vadd.f32 %v272, %v260
    %v275 = vadd.f32 %v273, %v261
    %v276 = vadd.f32 %v162, %v212
    %v277 = vadd.f32 %v163, %v213
    %v278 = vsub.f32 %v276, %v274
    %v279 = vsub.f32 %v277, %v275
    %v280 = vmul.f32 %v130, %v180
    %v281 = vmul.f32 %v131, %v181
    %v282 = vrcp.pop %v242
    %v283 = vmul.f32 %v280, %v282
    %v284 = vrcp.pop %v243
    %v285 = vmul.f32 %v281, %v284
    %v286 = vlog2.pop %v283
    %v287 = vmul.f32 %v286, 0.6931472
    %v288 = vlog2.pop %v285
    %v289 = vmul.f32 %v288, 0.6931472
    %v290 = vsub.f32 %v278, %v287
    %v291 = vsub.f32 %v279, %v289
    %v292 = vadd.f32 %v80, %v68
    %v293 = vadd.f32 %v81, %v69
    %v294 = vsub.f32 %v95, %v87
    %v295 = vsub.f32 %v97, %v89
    %v296 = vmul.f32 %v292, %v294
    %v297 = vmul.f32 %v293, %v295
    %v298 = vsub.f32 %v87, %v101
    %v299 = vsub.f32 %v89, %v103
    %v300 = vmul.f32 %v68, %v298
    %v301 = vmul.f32 %v69, %v299
    %v302 = vadd.f32 %v296, %v300
    %v303 = vadd.f32 %v297, %v301
    %v304 = vadd.f32 %v290, %v302
    %v305 = vadd.f32 %v291, %v303
    %v306 = vsub.f32 1.0, %v82
    %v307 = vsub.f32 1.0, %v83
    %v308 = vadd.f32 %v306, 1e-10
    %v309 = vadd.f32 %v307, 1e-10
    %v310 = vlog2.pop %v308
    %v311 = vmul.f32 %v310, 0.6931472
    %v312 = vlog2.pop %v309
    %v313 = vmul.f32 %v312, 0.6931472
    %v314 = vsub.f32 %v304, %v311
    %v315 = vsub.f32 %v305, %v313
    %v316 = vsub.f32 %v87, %v95
    %v317 = vsub.f32 %v89, %v97
    %v318 = vmul.f32 %v80, %v316
    %v319 = vmul.f32 %v81, %v317
    %v320 = vmul.f32 %v318, 1.442695
    %v321 = vpow.pop %v320
    %v322 = vmul.f32 %v319, 1.442695
    %v323 = vpow.pop %v322
    %v324 = vmul.f32 %v306, %v321
    %v325 = vmul.f32 %v307, %v323
    %v326 = vadd.f32 %v82, %v324
    %v327 = vadd.f32 %v83, %v325
    %v328 = vadd.f32 %v326, 1e-10
    %v329 = vadd.f32 %v327, 1e-10
    %v330 = vlog2.pop %v328
    %v331 = vmul.f32 %v330, 0.6931472
    %v332 = vlog2.pop %v329
    %v333 = vmul.f32 %v332, 0.6931472
    %v334 = vsub.f32 0.0, %v331
    %v335 = vsub.f32 0.0, %v333
    %vm336 = vcmp.le.f32.partialorder %v68, 1e-08
    %vm337 = vcmp.le.f32.partialorder %v69, 1e-08
    %v338 = vsel %vm336, %v334, %v314
    %v339 = vsel %vm337, %v335, %v315
    %v340 = vadd.f32 %v338, 0.0
    %v341 = vadd.f32 %v339, 0.0
    %342 = vst [vmem:[#allocation10] sm:$0xff] %v340
    %343 = vst [vmem:[#allocation10 + $0x8] sm:$0xff] %v341
    // Predicated region
    $region38: #{tpu_custom_call.1} parent=1 // pred_check
      _
    $region39: #{tpu_custom_call.1} parent=1 // pred_check_branch
      %345 = sbr.rel (0) target = $region41
    $region40: #{tpu_custom_call.1} parent=1 // pred_region
      %s347 = ssub.s32 256, 256
      %348 = vsyncadd [#allocation4], %s347
      %s350 = sshll.u32 [#allocation10], 4
      %s351 = int_to_ptr.vmem [resolvable:$true] %s350
      %353 = dma.vmem_to_hbm [thread:$0]  %s351, 256, %s5, [#allocation4]
    $region41: #{tpu_custom_call.1} parent=1 // pred_fallthru
      _
    // Predicated region
    $region42: #{tpu_custom_call.1} parent=1 // pred_check
      _
    $region43: #{tpu_custom_call.1} parent=1 // pred_check_branch
      %355 = sbr.rel (0) target = $region45
    $region44: #{tpu_custom_call.1} parent=1 // pred_region
      %356 = dma.done [#allocation4], 256
    $region45: #{tpu_custom_call.1} parent=1 // pred_fallthru
      _
    %357 = vsyncpa [#allocation3], 1
    %358 = vsyncpa [#allocation6], 1
    %359 = vsyncpa [#allocation9], 1
    %360 = vsyncpa [#allocation4], 1

</llo_original>
